<compile_context>
chip_gen: v5e
topology: v5e:2x2
jax: 0.10.0
libtpu: 0.0.40
codegen_flags: <defaults>
</compile_context>

<pallas_src>
import functools

import jax
import jax.numpy as jnp
from jax.experimental import pallas as pl
from jax.experimental.pallas import tpu as pltpu


# ---------------------------------------------------------------------------
# VMEM budgeting (generation-aware: v5e/v6e 128 MiB physical, v7x 64 MiB).
# ---------------------------------------------------------------------------
@functools.lru_cache(maxsize=None)
def _vmem_limit_bytes():
    try:
        cap = int(pltpu.get_tpu_info().vmem_capacity_bytes)
    except Exception:
        cap = 64 * 1024 * 1024  # conservative (v7x-sized) fallback
    return max(int(cap * 0.7), 16 * 1024 * 1024)


def _round_up(x, m):
    return ((x + m - 1) // m) * m


def _largest_dividing_tile(dim, cap, quanta=(256, 128)):
    """Largest multiple of a quantum that evenly divides `dim` and is <= cap."""
    for q in quanta:
        t = min((cap // q) * q, (dim // q) * q)
        while t >= q:
            if dim % t == 0:
                return t
            t -= q
    return None


def _pick_lane_tile(N, tn_target):
    """Lane-axis (128-quantum) tile for column-streamed linears; prefer >=2 tiles."""
    if N > tn_target:
        t = _largest_dividing_tile(N, tn_target, quanta=(128,))
        # TODO(synk): pad N to a multiple of 128 outside the kernel if this falls back.
        return t if t is not None else N
    if N >= 256 and N % 256 == 0:
        return N // 2  # >=2 tiles so the "parallel" axis can use both v7x TCs
    return N


def _pick_ff_tiles(R, D, Dff, x_bytes, out_bytes, w_bytes, budget, tm_target,
                   extra_fixed=0):
    """Row tile TM and d_ff tile TK under a VMEM budget.

    Prefers TK == Dff (weights fully resident -> no re-streaming across row tiles),
    else the largest 256-/128-aligned divisor of Dff that fits (never ragged).
    """
    def tk_for(tm):
        # per-row-tile resident bytes: double-buffered x & out blocks + 2 scratches
        fixed = tm * D * (2 * x_bytes + 2 * out_bytes + w_bytes + 4) + extra_fixed
        avail = max(budget - fixed, 0)
        # wi/wo slices are double-buffered by the pipeline: 2*(D*TK + TK*D)*w_bytes
        max_tk = avail // (4 * D * w_bytes)
        if max_tk >= Dff:
            return Dff
        tk = _largest_dividing_tile(Dff, max_tk, quanta=(256, 128))
        if tk is None:
            # TODO(synk): pad d_ff to a multiple of 128 outside the kernels; forcing
            # the full dimension here can exceed the scoped VMEM budget.
            tk = Dff
        return tk

    TM = min(R, tm_target)
    TK = tk_for(TM)
    # With fully resident wi/wo the row axis carries no extra weight traffic, so split
    # it (>=2 tiles) for v7x megacore.  When streaming, keep TM maximal instead.
    if TK == Dff and R >= 16 and pl.cdiv(R, TM) < 2:
        tm_half = _round_up((R + 1) // 2, 8)
        if tm_half < R:
            TM = tm_half
    return TM, TK


# ---------------------------------------------------------------------------
# One-time parameter prep: pre-cast streamed matmul weights to bf16 (MXU dtype).
# grow_tok_w_t stays f32 (tiny K=100 matmul that seeds the residual/accumulator).
# ---------------------------------------------------------------------------
def prepare_params(params, compute_dtype=jnp.bfloat16):
    p = dict(params)
    for k in ("wi_t", "wo_t", "pool_w_t", "dec_w_t", "grow_seq_w_t"):
        if k in p:
            p[k] = p[k].astype(compute_dtype)
    return p


# ---------------------------------------------------------------------------
# Kernel 1: dense layer with bias, tiled over output columns (weight streams).
# ---------------------------------------------------------------------------
def _linear_kernel(x_ref, w_ref, b_ref, o_ref):
    x = x_ref[...].astype(w_ref.dtype)
    acc = jnp.dot(x, w_ref[...], preferred_element_type=jnp.float32)
    o_ref[...] = (acc + b_ref[...].astype(jnp.float32)).astype(o_ref.dtype)


def pallas_linear(x, w_t, b, *, tn=2048):
    M, K = x.shape
    K2, N = w_t.shape
    assert K == K2 and b.shape == (N,)
    vmem_limit = _vmem_limit_bytes()
    w_bytes = w_t.dtype.itemsize
    # Keep the double-buffered weight slice well inside the scoped VMEM budget.
    tn_cap = max(128, (vmem_limit // 2) // max(2 * K * w_bytes, 1))
    TN = _pick_lane_tile(N, min(tn, tn_cap))
    return pl.pallas_call(
        _linear_kernel,
        out_shape=jax.ShapeDtypeStruct((M, N), x.dtype),
        grid=(pl.cdiv(N, TN),),
        in_specs=[
            pl.BlockSpec((M, K), lambda j: (0, 0)),
            pl.BlockSpec((K, TN), lambda j: (0, j)),
            pl.BlockSpec((1, TN), lambda j: (0, j)),
        ],
        out_specs=pl.BlockSpec((M, TN), lambda j: (0, j)),
        compiler_params=pltpu.CompilerParams(
            dimension_semantics=("parallel",),
            vmem_limit_bytes=vmem_limit),
    )(x, w_t, b.reshape(1, N))


# ---------------------------------------------------------------------------
# Kernel 2: two fused tiny linears (decode_latent -> grow_sequence), tiled over
# the second output dim.  M = batch rows (tiny) -> recomputing matmul 1 per tile
# is free; fusing removes a pallas_call + HBM round trip.
# ---------------------------------------------------------------------------
def _double_linear_kernel(x_ref, w1_ref, b1_ref, w2_ref, b2_ref, o_ref):
    x = x_ref[...].astype(w1_ref.dtype)
    h = jnp.dot(x, w1_ref[...], preferred_element_type=jnp.float32)
    h = h + b1_ref[...].astype(jnp.float32)
    y = jnp.dot(h.astype(w2_ref.dtype), w2_ref[...],
                preferred_element_type=jnp.float32) + b2_ref[...].astype(jnp.float32)
    o_ref[...] = y.astype(o_ref.dtype)


def pallas_double_linear(x, w1_t, b1, w2_t, b2, *, tn=2048):
    M, K = x.shape
    _, N1 = w1_t.shape
    _, N2 = w2_t.shape
    vmem_limit = _vmem_limit_bytes()
    TN = _pick_lane_tile(N2, tn)
    return pl.pallas_call(
        _double_linear_kernel,
        out_shape=jax.ShapeDtypeStruct((M, N2), x.dtype),
        grid=(pl.cdiv(N2, TN),),
        in_specs=[
            pl.BlockSpec((M, K), lambda j: (0, 0)),
            pl.BlockSpec((K, N1), lambda j: (0, 0)),
            pl.BlockSpec((1, N1), lambda j: (0, 0)),
            pl.BlockSpec((N1, TN), lambda j: (0, j)),
            pl.BlockSpec((1, TN), lambda j: (0, j)),
        ],
        out_specs=pl.BlockSpec((M, TN), lambda j: (0, j)),
        compiler_params=pltpu.CompilerParams(
            dimension_semantics=("parallel",),
            vmem_limit_bytes=vmem_limit),
    )(x, w1_t, b1.reshape(1, N1), w2_t, b2.reshape(1, N2))


# ---------------------------------------------------------------------------
# Kernel 3: fused T5LayerFF, tiled over rows (parallel) and d_ff (reduction).
#   out = x + relu(rmsnorm(x)*gamma @ wi_t) @ wo_t
# ---------------------------------------------------------------------------
def _t5_ff_kernel(x_ref, g_ref, wi_ref, wo_ref, o_ref, normed_ref, acc_ref, *, eps):
    k = pl.program_id(1)

    @pl.when(k == 0)
    def _():
        x = x_ref[...].astype(jnp.float32)
        var = jnp.mean(x * x, axis=-1, keepdims=True)
        normed = x * jax.lax.rsqrt(var + eps) * g_ref[...].astype(jnp.float32)
        normed_ref[...] = normed.astype(normed_ref.dtype)
        acc_ref[...] = x  # residual seed

    h = jnp.dot(normed_ref[...], wi_ref[...], preferred_element_type=jnp.float32)
    h = jnp.maximum(h, 0.0)
    acc_ref[...] += jnp.dot(h.astype(wo_ref.dtype), wo_ref[...],
                            preferred_element_type=jnp.float32)

    @pl.when(k == pl.num_programs(1) - 1)
    def _():
        o_ref[...] = acc_ref[...].astype(o_ref.dtype)


def pallas_t5_layer_ff(x3d, gamma, wi_t, wo_t, *, eps=1e-6, tm=512):
    B, S, D = x3d.shape
    Dff = wi_t.shape[1]
    R = B * S
    x2d = x3d.reshape(R, D)
    compute_dtype = wi_t.dtype
    vmem_limit = _vmem_limit_bytes()
    TM, TK = _pick_ff_tiles(
        R, D, Dff,
        x_bytes=x2d.dtype.itemsize, out_bytes=x2d.dtype.itemsize,
        w_bytes=wi_t.dtype.itemsize,
        budget=vmem_limit - (2 << 20), tm_target=tm)
    out2d = pl.pallas_call(
        functools.partial(_t5_ff_kernel, eps=eps),
        out_shape=jax.ShapeDtypeStruct((R, D), x3d.dtype),
        grid=(pl.cdiv(R, TM), pl.cdiv(Dff, TK)),
        in_specs=[
            pl.BlockSpec((TM, D), lambda i, k: (i, 0)),
            pl.BlockSpec((1, D), lambda i, k: (0, 0)),
            pl.BlockSpec((D, TK), lambda i, k: (0, k)),
            pl.BlockSpec((TK, D), lambda i, k: (k, 0)),
        ],
        out_specs=pl.BlockSpec((TM, D), lambda i, k: (i, 0)),
        scratch_shapes=[
            pltpu.VMEM((TM, D), compute_dtype),   # cached normalized activations
            pltpu.VMEM((TM, D), jnp.float32),     # accumulator (seeded with residual)
        ],
        compiler_params=pltpu.CompilerParams(
            dimension_semantics=("parallel", "arbitrary"),
            vmem_limit_bytes=vmem_limit),
    )(x2d, gamma.reshape(1, D), wi_t, wo_t)
    return out2d.reshape(B, S, D)


# ---------------------------------------------------------------------------
# Kernel 4 ('shrinking' mode): grow_tokens (K=100) fused into the T5 FF kernel.
# The (R, D) grow_tokens output never touches HBM: computed per row tile at k==0
# (f32), used as residual seed and rmsnorm input.
# ---------------------------------------------------------------------------
def _growtok_t5_ff_kernel(h_ref, gtw_ref, gtb_ref, g_ref, wi_ref, wo_ref, o_ref,
                          normed_ref, acc_ref, *, eps):
    k = pl.program_id(1)

    @pl.when(k == 0)
    def _():
        x = jnp.dot(h_ref[...].astype(jnp.float32), gtw_ref[...],
                    preferred_element_type=jnp.float32) + gtb_ref[...]
        var = jnp.mean(x * x, axis=-1, keepdims=True)
        normed = x * jax.lax.rsqrt(var + eps) * g_ref[...].astype(jnp.float32)
        normed_ref[...] = normed.astype(normed_ref.dtype)
        acc_ref[...] = x  # residual seed

    h = jnp.dot(normed_ref[...], wi_ref[...], preferred_element_type=jnp.float32)
    h = jnp.maximum(h, 0.0)
    acc_ref[...] += jnp.dot(h.astype(wo_ref.dtype), wo_ref[...],
                            preferred_element_type=jnp.float32)

    @pl.when(k == pl.num_programs(1) - 1)
    def _():
        o_ref[...] = acc_ref[...].astype(o_ref.dtype)


def pallas_growtok_t5_ff(h2d, gt_w_t, gt_b, gamma, wi_t, wo_t, *, B, S, dim_m,
                         eps=1e-6, tm=512):
    R, Kg = h2d.shape            # Kg == 100
    D = dim_m
    Dff = wi_t.shape[1]
    compute_dtype = wi_t.dtype
    vmem_limit = _vmem_limit_bytes()
    extra_fixed = 2 * min(R, tm) * Kg * h2d.dtype.itemsize + 2 * Kg * D * 4
    TM, TK = _pick_ff_tiles(
        R, D, Dff,
        x_bytes=0, out_bytes=h2d.dtype.itemsize,
        w_bytes=wi_t.dtype.itemsize,
        budget=vmem_limit - (2 << 20), tm_target=tm,
        extra_fixed=extra_fixed)
    out2d = pl.pallas_call(
        functools.partial(_growtok_t5_ff_kernel, eps=eps),
        out_shape=jax.ShapeDtypeStruct((R, D), h2d.dtype),
        grid=(pl.cdiv(R, TM), pl.cdiv(Dff, TK)),
        in_specs=[
            pl.BlockSpec((TM, Kg), lambda i, k: (i, 0)),
            pl.BlockSpec((Kg, D), lambda i, k: (0, 0)),
            pl.BlockSpec((1, D), lambda i, k: (0, 0)),
            pl.BlockSpec((1, D), lambda i, k: (0, 0)),
            pl.BlockSpec((D, TK), lambda i, k: (0, k)),
            pl.BlockSpec((TK, D), lambda i, k: (k, 0)),
        ],
        out_specs=pl.BlockSpec((TM, D), lambda i, k: (i, 0)),
        scratch_shapes=[
            pltpu.VMEM((TM, D), compute_dtype),
            pltpu.VMEM((TM, D), jnp.float32),
        ],
        compiler_params=pltpu.CompilerParams(
            dimension_semantics=("parallel", "arbitrary"),
            vmem_limit_bytes=vmem_limit),
    )(h2d, gt_w_t, gt_b.reshape(1, D), gamma.reshape(1, D), wi_t, wo_t)
    return out2d.reshape(B, S, D)


# ---------------------------------------------------------------------------
# Module wrapper (parameter container + forward), mirroring the PyTorch class.
# ---------------------------------------------------------------------------
def init_params(key, dim_m, set_input_size, latent_size, d_ff, latent_vec_dec):
    """Deterministic synthetic parameters (shapes match the nn.Module's __init__)."""
    ks = jax.random.split(key, 10)
    p = {}
    scale = 0.02
    if latent_vec_dec == "linear":
        p["pool_w_t"] = scale * jax.random.normal(
            ks[0], (latent_size, set_input_size * dim_m), jnp.float32)
        p["pool_b"] = scale * jax.random.normal(
            ks[1], (set_input_size * dim_m,), jnp.float32)
    elif latent_vec_dec == "shrinking":
        p["dec_w_t"] = scale * jax.random.normal(
            ks[0], (latent_size, 10 * set_input_size), jnp.float32)
        p["dec_b"] = scale * jax.random.normal(ks[1], (10 * set_input_size,), jnp.float32)
        p["grow_seq_w_t"] = scale * jax.random.normal(
            ks[2], (10 * set_input_size, 100 * set_input_size), jnp.float32)
        p["grow_seq_b"] = scale * jax.random.normal(
            ks[3], (100 * set_input_size,), jnp.float32)
        p["grow_tok_w_t"] = scale * jax.random.normal(ks[4], (100, dim_m), jnp.float32)
        p["grow_tok_b"] = scale * jax.random.normal(ks[5], (dim_m,), jnp.float32)
    else:
        raise ValueError("LatentDecoderLargeT5NormFF")
    # T5LayerFF params (T5DenseActDense: no biases; layer_norm weight init = ones).
    p["ln_gamma"] = jnp.ones((dim_m,), jnp.float32)
    p["wi_t"] = scale * jax.random.normal(ks[6], (dim_m, d_ff), jnp.float32)
    p["wo_t"] = scale * jax.random.normal(ks[7], (d_ff, dim_m), jnp.float32)
    return p


def latent_decoder_forward(latent, params, *, dim_m, set_input_size,
                           latent_vec_dec, eps=1e-6):
    B = latent.shape[0]
    if latent_vec_dec == "shrinking":
        # decode_latent + grow_sequence fused into one pallas_call (tiny rows).
        h = pallas_double_linear(latent, params["dec_w_t"], params["dec_b"],
                                 params["grow_seq_w_t"], params["grow_seq_b"])  # (B, 100*S)
        S = h.shape[1] // 100
        h2d = h.reshape(B * S, 100)
        # grow_tokens fused into the T5 FF kernel (no HBM round trip of (R, D)).
        return pallas_growtok_t5_ff(h2d, params["grow_tok_w_t"], params["grow_tok_b"],
                                    params["ln_gamma"], params["wi_t"], params["wo_t"],
                                    B=B, S=S, dim_m=dim_m, eps=eps)
    elif latent_vec_dec == "linear":
        h = pallas_linear(latent, params["pool_w_t"], params["pool_b"])        # (B, S*D)
        x = h.reshape(B, set_input_size, dim_m)
        return pallas_t5_layer_ff(x, params["ln_gamma"], params["wi_t"],
                                  params["wo_t"], eps=eps)
    else:
        raise ValueError("LatentDecoderLargeT5NormFF")


# Pure-JAX f32 reference for verification (matches the PyTorch module).
def reference_forward(latent, params, *, dim_m, set_input_size,
                      latent_vec_dec, eps=1e-6):
    B = latent.shape[0]
    if latent_vec_dec == "shrinking":
        h = latent @ params["dec_w_t"] + params["dec_b"]
        h = h @ params["grow_seq_w_t"] + params["grow_seq_b"]
        h = h.reshape(B, -1, 100)
        x = h @ params["grow_tok_w_t"] + params["grow_tok_b"]
    else:
        h = latent @ params["pool_w_t"] + params["pool_b"]
        x = h.reshape(B, set_input_size, dim_m)
    var = jnp.mean(x.astype(jnp.float32) ** 2, axis=-1, keepdims=True)
    n = x * jax.lax.rsqrt(var + eps) * params["ln_gamma"]
    ff = jnp.maximum(n @ params["wi_t"], 0.0) @ params["wo_t"]
    return x + ff


if __name__ == "__main__":
    # Small shapes consistent with the module.
    B, latent_size, set_input_size, dim_m, d_ff = 2, 32, 8, 32, 64
    key = jax.random.PRNGKey(0)
    k_lat, k_par_lin, k_par_shr = jax.random.split(key, 3)
    latent = jax.random.normal(k_lat, (B, latent_size), jnp.float32)

    for mode, kp in (("linear", k_par_lin), ("shrinking", k_par_shr)):
        params = init_params(kp, dim_m, set_input_size, latent_size, d_ff, mode)
        dev_params = prepare_params(params)   # one-time bf16 weight cast (not per call)
        out = latent_decoder_forward(latent, dev_params, dim_m=dim_m,
                                     set_input_size=set_input_size,
                                     latent_vec_dec=mode)
        out = jax.block_until_ready(out)
        ref = reference_forward(latent, params, dim_m=dim_m,
                                set_input_size=set_input_size,
                                latent_vec_dec=mode)
        assert out.shape == (B, set_input_size, dim_m), out.shape
        # bf16 MXU inputs (f32 accumulation) -> slightly looser tolerance vs f32 ref.
        assert jnp.allclose(out, ref, rtol=1e-2, atol=1e-2), (
            f"mismatch in mode={mode}: max abs err "
            f"{float(jnp.max(jnp.abs(out - ref)))}")

    print("KERNEL_OK")
</pallas_src>

<mosaic_0001>
module attributes {stable_mosaic.version = 11 : i64} {
  func.func @_linear_kernel(%arg0: i32, %arg1: memref<2x32xf32, #tpu.memory_space<vmem>>, %arg2: memref<32x128xbf16, #tpu.memory_space<vmem>>, %arg3: memref<1x128xf32, #tpu.memory_space<vmem>>, %arg4: memref<2x128xf32, #tpu.memory_space<vmem>>) attributes {dimension_semantics = [#tpu.dimension_semantics<parallel>], iteration_bounds = array<i64: 2>, scalar_prefetch = 0 : i64, scratch_operands = 0 : i64, tpu.core_type = #tpu.core_type<tc>, window_params = [{pipeline_mode = #tpu.pipeline_mode<synchronous>, transform_indices = @transform_0, window_bounds = array<i64: 2, 32>}, {transform_indices = @transform_1, window_bounds = array<i64: 32, 128>}, {transform_indices = @transform_2, window_bounds = array<i64: 1, 128>}, {transform_indices = @transform_3, window_bounds = array<i64: 2, 128>}]} {
    %c0 = arith.constant 0 : index
    %c0_0 = arith.constant 0 : index
    %0 = vector.load %arg1[%c0, %c0_0] : memref<2x32xf32, #tpu.memory_space<vmem>>, vector<2x32xf32>
    %1 = arith.truncf %0 : vector<2x32xf32> to vector<2x32xbf16>
    %c0_1 = arith.constant 0 : index
    %c0_2 = arith.constant 0 : index
    %2 = vector.load %arg2[%c0_1, %c0_2] : memref<32x128xbf16, #tpu.memory_space<vmem>>, vector<32x128xbf16>
    %cst = arith.constant dense<0.000000e+00> : vector<2x128xf32>
    %3 = tpu.matmul %1, %2, %cst {dimension_numbers = #tpu.dot_dimension_numbers<[1], [0], [0], [1], [0, 0, 1, 1], [], []>} : vector<2x32xbf16>, vector<32x128xbf16>, vector<2x128xf32> -> vector<2x128xf32>
    %c0_3 = arith.constant 0 : index
    %c0_4 = arith.constant 0 : index
    %4 = vector.load %arg3[%c0_3, %c0_4] : memref<1x128xf32, #tpu.memory_space<vmem>>, vector<1x128xf32>
    %5 = vector.broadcast %4 : vector<1x128xf32> to vector<2x128xf32>
    %6 = arith.addf %3, %5 : vector<2x128xf32>
    %c0_5 = arith.constant 0 : index
    %c0_6 = arith.constant 0 : index
    %7 = vector.load %arg4[%c0_5, %c0_6] : memref<2x128xf32, #tpu.memory_space<vmem>>, vector<2x128xf32>
    tpu.vector_store %arg4[%c0_5, %c0_6], %6 {strides = array<i32>} : memref<2x128xf32, #tpu.memory_space<vmem>>, vector<2x128xf32>,
    return
  }
  func.func @transform_0(%arg0: i32) -> (i32, i32) {
    %c0_i32 = arith.constant 0 : i32
    %c0_i32_0 = arith.constant 0 : i32
    %c0_i32_1 = arith.constant 0 : i32
    return %c0_i32, %c0_i32_0 : i32, i32
  }
  func.func @transform_1(%arg0: i32) -> (i32, i32) {
    %c0_i32 = arith.constant 0 : i32
    %c0_i32_0 = arith.constant 0 : i32
    return %c0_i32, %arg0 : i32, i32
  }
  func.func @transform_2(%arg0: i32) -> (i32, i32) {
    %c0_i32 = arith.constant 0 : i32
    %c0_i32_0 = arith.constant 0 : i32
    return %c0_i32, %arg0 : i32, i32
  }
  func.func @transform_3(%arg0: i32) -> (i32, i32) {
    %c0_i32 = arith.constant 0 : i32
    %c0_i32_0 = arith.constant 0 : i32
    return %c0_i32, %arg0 : i32, i32
  }
}

</mosaic_0001>

<llo_original>
// kernel: tpu_custom_call.1
$region0: #{tpu_custom_call.1}
  #allocation0 [shape = 'u32[]', space=smem, size = 0x4, offset = 0x4, fixed_abs, tag = 'smem constant byte address 0x4 - core index']
  #allocation1 [shape = 'u32[72,128]{1,0:T(1,128)}', space=vmem, size = 0x9000, scoped, tag = 'internal scratch']
  %s0 = inlined_call_operand.hbm [shape: f32[2,32], index: 0, kind: input, shape index: {}]
  %s1 = inlined_call_operand.hbm [shape: bf16[32,256], index: 1, kind: input, shape index: {}]
  %s2 = inlined_call_operand.hbm [shape: f32[1,256], index: 2, kind: input, shape index: {}]
  %s3 = inlined_call_operand.hbm [shape: f32[2,256], index: 3, kind: output, shape index: {}]
  %s4 = sld [smem:[#allocation0]]
  $region57: #{tpu_custom_call.1} parent=0
    _
  %s6 = ssub.s32 1, %s4
  %s7 = scalar_select 0, %s6, %s4
  $region1: #{tpu_custom_call.1} parent=0
    #allocation2 [shape = 'u8[1024]{0}', space=vmem, size = 0x400, scoped, tag = 'input window, operand 0, single buffered']
    #allocation3 [shape = 's32[2]{0}', space=sflag, size = 0x8, scoped, tag = 'scoped memory for tpu_custom_call.1']
    #allocation4 [shape = 's32[2]{0}', space=sflag, size = 0x8, scoped, tag = 'scoped memory for tpu_custom_call.1']
    #allocation5 [shape = 'u8[16384]{0}', space=vmem, size = 0x4000, scoped, tag = 'input window, operand 1']
    #allocation6 [shape = 's32[2]{0}', space=sflag, size = 0x8, scoped, tag = 'scoped memory for tpu_custom_call.1']
    #allocation7 [shape = 'u8[1024]{0}', space=vmem, size = 0x400, scoped, tag = 'input window, operand 2']
    #allocation8 [shape = 'u8[2048]{0}', space=vmem, size = 0x800, scoped, tag = 'output window, operand 0']
    %8 = vsyncpa [#allocation3], 0
    %9 = vsyncpa [#allocation6], 0
    %s10 = scalar_lea.sflag [#allocation6], 1
    %11 = vsyncpa %s10, 0
    %12 = vsyncpa [#allocation4], 0
    %s13 = scalar_lea.sflag [#allocation4], 1
    %14 = vsyncpa %s13, 0
    loop: start=0, step=1, limit=4
    $region2: #{tpu_custom_call.1} parent=1 // loop_pre_header
      _
    $region3: #{tpu_custom_call.1} parent=1 // loop_header
      %s16 = sphi 0, %s20
      %p17 = scmp.ge.s32.totalorder %s16, 4
      %s24 = sphi 0, %s24
      %s26 = sphi 0, %s24
      %s27 = sphi 0, %s26
      %s41 = sphi 0, %s27
      %s47 = sphi 0, %s49
      %s50 = sphi 0, %s47
      %s51 = sphi 0, %s50
      %s67 = sphi 0, %s51
      %s73 = sphi 0, %s75
      %s76 = sphi 0, %s73
      %s77 = sphi 0, %s76
      %s93 = sphi 0, %s77
      %s99 = sphi 0, %s101
      %s102 = sphi 0, %s99
      %s103 = sphi 0, %s102
      %s119 = sphi 0, %s103
    $region4: #{tpu_custom_call.1} parent=1 // loop_header_branch
      %19 = sbr.rel (%p17) target = $region8
    $region5: #{tpu_custom_call.1} parent=1 // loop_body
      %s21 = ssub.s32 %s16, 1
      %s22 = ssub.s32 %s16, 2
      %s23 = sadd.s32 %s16, 1
      %s25 = sadd.s32 %s24, 1
      %p28 = scmp.eq.s32.totalorder %s16, 1
      %p29 = scmp.ne.s32.totalorder %s24, %s26
      %p30 = scmp.eq.s32.totalorder %s16, 0
      %p31 = por %p29, %p30
      %p32 = scmp.ne.s32.totalorder %s24, %s26
      %p33 = scmp.eq.s32.totalorder %s21, 1
      %p34 = por %p32, %p33
      %p35 = scmp.ne.s32.totalorder %s26, %s27
      %p36 = scmp.eq.s32.totalorder %s21, 0
      %p37 = por %p35, %p36
      %p38 = scmp.ne.s32.totalorder %s26, %s27
      %p39 = scmp.eq.s32.totalorder %s22, 1
      %p40 = por %p38, %p39
      %p42 = scmp.ne.s32.totalorder %s27, %s41
      %p43 = scmp.eq.s32.totalorder %s22, 0
      %p44 = por %p42, %p43
      %s45 = ssub.s32 %s16, %s23
      %p46 = scmp.eq.s32.totalorder %s45, 0
      %s48 = sadd.s32 %s47, 1
      %s49 = scalar_select %p46, %s47, %s48
      %p52 = pneg %p46
      %p53 = scmp.eq.s32.totalorder %s16, 1
      %p54 = por %p52, %p53
      %p55 = scmp.ne.s32.totalorder %s47, %s50
      %p56 = scmp.eq.s32.totalorder %s16, 0
      %p57 = por %p55, %p56
      %p58 = scmp.ne.s32.totalorder %s47, %s50
      %p59 = scmp.eq.s32.totalorder %s21, 1
      %p60 = por %p58, %p59
      %p61 = scmp.ne.s32.totalorder %s50, %s51
      %p62 = scmp.eq.s32.totalorder %s21, 0
      %p63 = por %p61, %p62
      %p64 = scmp.ne.s32.totalorder %s50, %s51
      %p65 = scmp.eq.s32.totalorder %s22, 1
      %p66 = por %p64, %p65
      %p68 = scmp.ne.s32.totalorder %s51, %s67
      %p69 = scmp.eq.s32.totalorder %s22, 0
      %p70 = por %p68, %p69
      %s71 = ssub.s32 %s16, %s23
      %p72 = scmp.eq.s32.totalorder %s71, 0
      %s74 = sadd.s32 %s73, 1
      %s75 = scalar_select %p72, %s73, %s74
      %p78 = pneg %p72
      %p79 = scmp.eq.s32.totalorder %s16, 1
      %p80 = por %p78, %p79
      %p81 = scmp.ne.s32.totalorder %s73, %s76
      %p82 = scmp.eq.s32.totalorder %s16, 0
      %p83 = por %p81, %p82
      %p84 = scmp.ne.s32.totalorder %s73, %s76
      %p85 = scmp.eq.s32.totalorder %s21, 1
      %p86 = por %p84, %p85
      %p87 = scmp.ne.s32.totalorder %s76, %s77
      %p88 = scmp.eq.s32.totalorder %s21, 0
      %p89 = por %p87, %p88
      %p90 = scmp.ne.s32.totalorder %s76, %s77
      %p91 = scmp.eq.s32.totalorder %s22, 1
      %p92 = por %p90, %p91
      %p94 = scmp.ne.s32.totalorder %s77, %s93
      %p95 = scmp.eq.s32.totalorder %s22, 0
      %p96 = por %p94, %p95
      %s97 = ssub.s32 %s16, %s23
      %p98 = scmp.eq.s32.totalorder %s97, 0
      %s100 = sadd.s32 %s99, 1
      %s101 = scalar_select %p98, %s99, %s100
      %p104 = pneg %p98
      %p105 = scmp.eq.s32.totalorder %s16, 1
      %p106 = por %p104, %p105
      %p107 = scmp.ne.s32.totalorder %s99, %s102
      %p108 = scmp.eq.s32.totalorder %s16, 0
      %p109 = por %p107, %p108
      %p110 = scmp.ne.s32.totalorder %s99, %s102
      %p111 = scmp.eq.s32.totalorder %s21, 1
      %p112 = por %p110, %p111
      %p113 = scmp.ne.s32.totalorder %s102, %s103
      %p114 = scmp.eq.s32.totalorder %s21, 0
      %p115 = por %p113, %p114
      %p116 = scmp.ne.s32.totalorder %s102, %s103
      %p117 = scmp.eq.s32.totalorder %s22, 1
      %p118 = por %p116, %p117
      %p120 = scmp.ne.s32.totalorder %s103, %s119
      %p121 = scmp.eq.s32.totalorder %s22, 0
      %p122 = por %p120, %p121
      %p123 = scmp.le.s32.totalorder 1, %s16
      %p124 = scmp.lt.s32.totalorder %s16, 3
      %p125 = pnand %p123, %p124
      %p126 = pneg %p125
      // Predicated region
      $region9: #{tpu_custom_call.1} parent=5 // pred_check
        _
      $region10: #{tpu_custom_call.1} parent=5 // pred_check_branch
        %128 = sbr.rel (%p125) target = $region12
      $region11: #{tpu_custom_call.1} parent=5 // pred_region
        %s129 = ssub.s32 %s16, 1
        // Predicated region
        $region13: #{tpu_custom_call.1} parent=11 // pred_check
          %p130 = pneg %p37
        $region14: #{tpu_custom_call.1} parent=11 // pred_check_branch
          %132 = sbr.rel (%p130) target = $region16
        $region15: #{tpu_custom_call.1} parent=11 // pred_region
          %134 = vsyncadd [#allocation3], 0
          %s136 = sshll.u32 %s0, 4
          %s137 = int_to_ptr.hbm [resolvable:$true] %s136
          %s138 = sshll.u32 [#allocation2], 4
          %s139 = int_to_ptr.vmem [resolvable:$true] %s138
          %141 = dma.hbm_to_vmem [thread:$0]  %s137, 32, %s139, [#allocation3]
        $region16: #{tpu_custom_call.1} parent=11 // pred_fallthru
          _
      $region12: #{tpu_custom_call.1} parent=5 // pred_fallthru
        _
      %p142 = scmp.lt.s32.totalorder %s16, 2
      // Predicated region
      $region17: #{tpu_custom_call.1} parent=5 // pred_check
        %p143 = pneg %p142
      $region18: #{tpu_custom_call.1} parent=5 // pred_check_branch
        %145 = sbr.rel (%p143) target = $region20
      $region19: #{tpu_custom_call.1} parent=5 // pred_region
        // Predicated region
        $region21: #{tpu_custom_call.1} parent=19 // pred_check
          %p146 = pneg %p57
        $region22: #{tpu_custom_call.1} parent=19 // pred_check_branch
          %148 = sbr.rel (%p146) target = $region24
        $region23: #{tpu_custom_call.1} parent=19 // pred_region
          %s149 = sand.u32 %s16, 1
          %s150 = scalar_lea.sflag [#allocation6], %s149
          %s151 = sand.u32 %s47, 1
          %s152 = smul.addr %s151, 16
          %s153 = scalar_lea.vmem [#allocation5], %s152
          %155 = vsyncadd %s150, 0
          %s156 = smul.addr %s16, 4
          %s157 = scalar_lea.hbm %s1, %s156
          %s158 = sshll.u32 %s157, 4
          %s159 = int_to_ptr.hbm [resolvable:$true] %s158
          %s160 = sshll.u32 %s153, 4
          %s161 = int_to_ptr.vmem [resolvable:$true] %s160
          %166 = dma.hbm_to_vmem [thread:$0]  %s159, 256, %s161, %s150, 128, 64, 4
        $region24: #{tpu_custom_call.1} parent=19 // pred_fallthru
          _
        // Predicated region
        $region25: #{tpu_custom_call.1} parent=19 // pred_check
          %p167 = pneg %p83
        $region26: #{tpu_custom_call.1} parent=19 // pred_check_branch
          %169 = sbr.rel (%p167) target = $region28
        $region27: #{tpu_custom_call.1} parent=19 // pred_region
          %s170 = sand.u32 %s16, 1
          %s171 = scalar_lea.sflag [#allocation6], %s170
          %s172 = sand.u32 %s73, 1
          %s173 = scalar_lea.vmem [#allocation7], %s172
          %175 = vsyncadd %s171, 0
          %s176 = scalar_lea.hbm %s2, %s16
          %s178 = sshll.u32 %s176, 4
          %s179 = int_to_ptr.hbm [resolvable:$true] %s178
          %s180 = sshll.u32 %s173, 4
          %s181 = int_to_ptr.vmem [resolvable:$true] %s180
          %183 = dma.hbm_to_vmem [thread:$0]  %s179, 16, %s181, %s171
        $region28: #{tpu_custom_call.1} parent=19 // pred_fallthru
          _
      $region20: #{tpu_custom_call.1} parent=5 // pred_fallthru
        _
      %p184 = scmp.le.s32.totalorder 1, %s16
      %p185 = scmp.lt.s32.totalorder %s16, 3
      %p186 = pnand %p184, %p185
      %p187 = pneg %p186
      // Predicated region
      $region29: #{tpu_custom_call.1} parent=5 // pred_check
        _
      $region30: #{tpu_custom_call.1} parent=5 // pred_check_branch
        %189 = sbr.rel (%p186) target = $region32
      $region31: #{tpu_custom_call.1} parent=5 // pred_region
        %s190 = ssub.s32 %s16, 1
        // Predicated region
        $region33: #{tpu_custom_call.1} parent=31 // pred_check
          %p191 = pneg %p37
        $region34: #{tpu_custom_call.1} parent=31 // pred_check_branch
          %193 = sbr.rel (%p191) target = $region36
        $region35: #{tpu_custom_call.1} parent=31 // pred_region
          %195 = dma.done [#allocation3], 32
        $region36: #{tpu_custom_call.1} parent=31 // pred_fallthru
          _
        %s196 = sand.u32 %s21, 1
        %s197 = scalar_lea.sflag [#allocation6], %s196
        %s198 = sand.u32 %s50, 1
        %s199 = smul.addr %s198, 16
        %s200 = scalar_lea.vmem [#allocation5], %s199
        // Predicated region
        $region37: #{tpu_custom_call.1} parent=31 // pred_check
          %p201 = pneg %p63
        $region38: #{tpu_custom_call.1} parent=31 // pred_check_branch
          %203 = sbr.rel (%p201) target = $region40
        $region39: #{tpu_custom_call.1} parent=31 // pred_region
          %205 = dma.done %s197, 256
        $region40: #{tpu_custom_call.1} parent=31 // pred_fallthru
          _
        %s206 = sand.u32 %s21, 1
        %s207 = scalar_lea.sflag [#allocation6], %s206
        %s208 = sand.u32 %s76, 1
        %s209 = scalar_lea.vmem [#allocation7], %s208
        // Predicated region
        $region41: #{tpu_custom_call.1} parent=31 // pred_check
          %p210 = pneg %p89
        $region42: #{tpu_custom_call.1} parent=31 // pred_check_branch
          %212 = sbr.rel (%p210) target = $region44
        $region43: #{tpu_custom_call.1} parent=31 // pred_region
          %214 = dma.done %s207, 16
        $region44: #{tpu_custom_call.1} parent=31 // pred_fallthru
          _
        %p215 = pneg %p37
        %p216 = pneg %p34
        %s217 = sand.u32 %s21, 1
        %s218 = scalar_lea.sflag [#allocation6], %s217
        %s219 = sand.u32 %s50, 1
        %s220 = smul.addr %s219, 16
        %s221 = scalar_lea.vmem [#allocation5], %s220
        %p222 = pneg %p63
        %p223 = pneg %p60
        %s224 = sand.u32 %s21, 1
        %s225 = scalar_lea.sflag [#allocation6], %s224
        %s226 = sand.u32 %s76, 1
        %s227 = scalar_lea.vmem [#allocation7], %s226
        %p228 = pneg %p89
        %p229 = pneg %p86
        %p230 = pneg %p115
        %p231 = pneg %p112
        %s232 = sand.u32 %s102, 1
        %s233 = scalar_lea.sflag [#allocation4], %s232
        %s234 = sand.u32 %s102, 1
        %s235 = smul.addr %s234, 2
        %s236 = scalar_lea.vmem [#allocation8], %s235
        %v238 = vld [vmem:[#allocation2] sm:$0x3]
        %v239 = vpack.c.bf16 %v238, %v238
        %v240 = vld [vmem:[%s200] sm:$0xf]
        %v241 = vld [vmem:[%s200 + $0x4] sm:$0xf]
        %v242 = vld [vmem:[%s200 + $0x8] sm:$0xf]
        %v243 = vld [vmem:[%s200 + $0xc] sm:$0xf]
        %v244 = vld [vmem:[%s209] sm:$0x1]
        %v246 = vperm.slane %v244, 0
        %v252 = vunpack.c.l.b16 %v240
        %v253 = vunpack.c.l.b16 %v241
        %v254 = vunpack.c.l.b16 %v242
        %v255 = vunpack.c.l.b16 %v243
        %v256 = vpack.c.b16 %v253, %v252
        %v257 = vpack.c.b16 %v255, %v254
        %vm260 = vcmask 261120
        %v262 = vsel %vm260, %v239, 0
        %264 = vmatpush.bf16.msra.mxu0 0
        %265 = vmatpush.bf16.msra.mxu0 0
        %266 = vmatpush.bf16.msra.mxu0 0
        %267 = vmatpush.bf16.msra.mxu0 0
        %268 = vmatpush.bf16.msra.mxu0 0
        %269 = vmatpush.bf16.msra.mxu0 0
        %270 = vmatpush.bf16.msra.mxu0 %v257
        %271 = vmatpush.bf16.msra.mxu0 %v256
        %272 = vmatmul.bf16.gmra.mxu0 %v262
        %v273 = vpop.f32.mrf.mxu0
        %v274 = vadd.f32 %v246, %v273
        %v275 = vpop.f32.mrf.mxu0
        %276 = vdwg.mxu0
        %277 = vst [vmem:[%s236] sm:$0x3] %v274
        %s278 = sand.u32 %s102, 1
        %s279 = scalar_lea.sflag [#allocation4], %s278
        %s280 = sand.u32 %s102, 1
        %s281 = smul.addr %s280, 2
        %s282 = scalar_lea.vmem [#allocation8], %s281
        // Predicated region
        $region45: #{tpu_custom_call.1} parent=31 // pred_check
          %p283 = pneg %p112
        $region46: #{tpu_custom_call.1} parent=31 // pred_check_branch
          %285 = sbr.rel (%p283) target = $region48
        $region47: #{tpu_custom_call.1} parent=31 // pred_region
          %287 = vsyncadd %s279, 0
          %s288 = smul.addr %s21, 2
          %s289 = scalar_lea.hbm %s3, %s288
          %s291 = sshll.u32 %s282, 4
          %s292 = int_to_ptr.vmem [resolvable:$true] %s291
          %s293 = sshll.u32 %s289, 4
          %s294 = int_to_ptr.hbm [resolvable:$true] %s293
          %296 = dma.vmem_to_hbm [thread:$0]  %s292, 32, %s294, %s279
        $region48: #{tpu_custom_call.1} parent=31 // pred_fallthru
          _
      $region32: #{tpu_custom_call.1} parent=5 // pred_fallthru
        _
      %p297 = scmp.le.s32.totalorder 2, %s16
      // Predicated region
      $region49: #{tpu_custom_call.1} parent=5 // pred_check
        %p298 = pneg %p297
      $region50: #{tpu_custom_call.1} parent=5 // pred_check_branch
        %300 = sbr.rel (%p298) target = $region52
      $region51: #{tpu_custom_call.1} parent=5 // pred_region
        %s301 = ssub.s32 %s16, 2
        // Predicated region
        $region53: #{tpu_custom_call.1} parent=51 // pred_check
          %p302 = pneg %p118
        $region54: #{tpu_custom_call.1} parent=51 // pred_check_branch
          %304 = sbr.rel (%p302) target = $region56
        $region55: #{tpu_custom_call.1} parent=51 // pred_region
          %s305 = sand.u32 %s103, 1
          %s306 = scalar_lea.sflag [#allocation4], %s305
          %s307 = sand.u32 %s103, 1
          %s308 = smul.addr %s307, 2
          %s309 = scalar_lea.vmem [#allocation8], %s308
          %311 = dma.done %s306, 32
        $region56: #{tpu_custom_call.1} parent=51 // pred_fallthru
          _
      $region52: #{tpu_custom_call.1} parent=5 // pred_fallthru
        _
    $region6: #{tpu_custom_call.1} parent=1 // loop_footer
      %s20 = sadd.s32 1, %s16
    $region7: #{tpu_custom_call.1} parent=1 // loop_footer_branch
      %15 = sbr.rel target = $region3
    $region8: #{tpu_custom_call.1} parent=1 // loop_exit
      _
    %312 = vsyncpa [#allocation3], 1
    %s313 = scalar_lea.sflag [#allocation3], 1
    %314 = vsyncpa %s313, 1
    %315 = vsyncpa [#allocation6], 1
    %s316 = scalar_lea.sflag [#allocation6], 1
    %317 = vsyncpa %s316, 1
    %318 = vsyncpa [#allocation4], 1
    %s319 = scalar_lea.sflag [#allocation4], 1
    %320 = vsyncpa %s319, 1

</llo_original>
